<compile_context>
chip_gen: v5e
topology: v5e:2x2
jax: 0.10.0
libtpu: 0.0.40
codegen_flags: <defaults>
</compile_context>

<pallas_src>
import numpy as np

import jax
import jax.numpy as jnp
from jax.experimental import pallas as pl
from jax.experimental.pallas import tpu as pltpu


# ----------------------------- kernel body ---------------------------------


def _mlp_kernel(x_ref, w1_ref, b1_ref, w2_ref, b2_ref, w3_ref, b3_ref, o_ref):
    """One batch tile: 3 MXU matmuls, f32 bias-add/ReLU epilogues on the VPU."""
    wdt = w1_ref.dtype  # matmul operand dtype (f32 or bf16); accumulation is f32.
    x = x_ref[...]
    if x.dtype != wdt:
        # In-kernel cast (VMEM only) so the wrapper never adds an extra HBM
        # round trip just to change x's dtype.
        x = x.astype(wdt)
    h1 = jnp.dot(x, w1_ref[...], preferred_element_type=jnp.float32) + b1_ref[...]
    h1 = jnp.maximum(h1, 0.0)
    h2 = jnp.dot(h1.astype(wdt), w2_ref[...],
                 preferred_element_type=jnp.float32) + b2_ref[...]
    h2 = jnp.maximum(h2, 0.0)
    out = jnp.dot(h2.astype(wdt), w3_ref[...],
                  preferred_element_type=jnp.float32) + b3_ref[...]
    o_ref[...] = out.astype(o_ref.dtype)


# --------------------------- tiling heuristics ------------------------------


def _device_kind():
    try:
        return jax.devices()[0].device_kind.lower()
    except Exception:  # pragma: no cover - defensive; default to generic.
        return ""


def _round_up(v, m):
    return ((v + m - 1) // m) * m


def _vmem_estimate(tile_b, x_itemsize, out_itemsize):
    """Rough per-tile VMEM footprint (bytes), counting the 128-lane padding of
    the 51-wide x tile, the f32 h1/h2 temporaries, and double buffering of the
    pipelined input/output tiles."""
    per_row = (2 * 128 * x_itemsize      # x tile, double-buffered, lane-padded
               + 128 * 4                 # h1 (f32)
               + 128 * 4                 # h2 (f32, lane-padded from 64)
               + 2 * 128 * out_itemsize)  # out tile, double-buffered, lane-padded
    return tile_b * per_row + (64 << 10)  # + weights/biases (generous)


def _pick_tile_b(batch, max_tile_b, *, two_tensorcores, f32_x, v5e):
    cap = max_tile_b
    if v5e and f32_x:
        # v5e: keep the f32 footprint modest (its default scoped VMEM is 16 MiB
        # and HBM is slower, so the tile bump buys less there anyway).
        cap = min(cap, 4096)
    # Never bigger than the (rounded-up) batch itself.
    t = min(cap, max(256, _round_up(batch, 256)))
    if two_tensorcores and batch > 256:
        # v7x only: keep >= 2 grid steps so both TensorCores get work along the
        # "parallel" axis, and try to keep the step count even for balance.
        t = min(t, max(256, _round_up(pl.cdiv(batch, 2), 256)))
        steps = pl.cdiv(batch, t)
        if steps > 1 and steps % 2 == 1:
            t = max(256, _round_up(pl.cdiv(batch, steps + 1), 256))
    return int(t)


# ------------------------------- wrapper ------------------------------------


def two_hidden_layer_nn(x, params, *, compute_dtype=None, out_dtype=jnp.float32,
                        max_tile_b=8192, small_batch=2048):
    """Forward pass of TwoHiddenLayerNN.

    x: (B, 51).  params: w1,b1,w2,b2,w3,b3 with w stored as (in, out) and b as
    (1, out).  compute_dtype=jnp.bfloat16 runs the MXU in bf16 (weights cast in
    the wrapper, x cast in-kernel if needed); accumulation and the bias/ReLU
    epilogue stay f32.  out_dtype controls the written output dtype.
    """
    B, D_in = x.shape
    w1, b1 = params["w1"], params["b1"]
    w2, b2 = params["w2"], params["b2"]
    w3, b3 = params["w3"], params["b3"]
    D_out = w3.shape[1]

    if compute_dtype is not None:
        # Only the tiny weights are cast here; casting x in the wrapper would
        # itself cost an extra HBM read+write of x, defeating the purpose.
        w1 = w1.astype(compute_dtype)
        w2 = w2.astype(compute_dtype)
        w3 = w3.astype(compute_dtype)
        # Biases stay float32 so the epilogue runs in f32 on every generation.

    if B <= small_batch:
        # Whole problem fits comfortably in VMEM: one gridless call,
        # whole-array blocks, no padding, no pipeline prologue/epilogue.
        return pl.pallas_call(
            _mlp_kernel,
            out_shape=jax.ShapeDtypeStruct((B, D_out), out_dtype),
        )(x, w1, b1, w2, b2, w3, b3)

    # ------------------------- tiled (large-batch) path ---------------------
    kind = _device_kind()
    is_v7 = "v7" in kind
    is_v5e = ("v5e" in kind) or ("v5 lite" in kind) or ("v5lite" in kind)

    x_bytes = x.dtype.itemsize
    out_bytes = np.dtype(out_dtype).itemsize
    tile_b = _pick_tile_b(B, max_tile_b,
                          two_tensorcores=is_v7,
                          f32_x=(x_bytes >= 4),
                          v5e=is_v5e)

    # Keep the tile within a safe scoped-VMEM ceiling for the generation
    # (v7x has 64 MiB physical VMEM per TC; v5e/v6e have 128 MiB).
    vmem_ceiling = (48 << 20) if is_v7 else (96 << 20)
    while tile_b > 256 and _vmem_estimate(tile_b, x_bytes, out_bytes) > vmem_ceiling:
        tile_b -= 256
    vmem_limit = int(min(vmem_ceiling,
                         max(32 << 20,
                             2 * _vmem_estimate(tile_b, x_bytes, out_bytes))))

    def _rep(a):
        # Weights/biases total ~30 KB: replicated block whose index never
        # moves, so they are fetched once and stay resident across the grid.
        return pl.BlockSpec(a.shape, lambda i: (0, 0))

    grid = (pl.cdiv(B, tile_b),)  # ragged last block handled by Pallas masking
    return pl.pallas_call(
        _mlp_kernel,
        out_shape=jax.ShapeDtypeStruct((B, D_out), out_dtype),
        grid_spec=pltpu.PrefetchScalarGridSpec(
            num_scalar_prefetch=0,
            grid=grid,
            in_specs=[
                pl.BlockSpec((tile_b, D_in), lambda i: (i, 0)),  # x tile
                _rep(w1), _rep(b1),
                _rep(w2), _rep(b2),
                _rep(w3), _rep(b3),
            ],
            out_specs=pl.BlockSpec((tile_b, D_out), lambda i: (i, 0)),
        ),
        compiler_params=pltpu.CompilerParams(
            dimension_semantics=("parallel",),
            vmem_limit_bytes=vmem_limit,
        ),
    )(x, w1, b1, w2, b2, w3, b3)


# --------------------------- init & reference -------------------------------


def init_params(key):
    """nn.Linear-style init U(-1/sqrt(fan_in), +1/sqrt(fan_in)); weights stored
    pre-transposed as (in_features, out_features), biases as (1, out_features)."""
    dims = [(51, 128), (128, 64), (64, 9)]
    params = {}
    for idx, (fan_in, fan_out) in enumerate(dims, start=1):
        key, kw, kb = jax.random.split(key, 3)
        bound = 1.0 / jnp.sqrt(jnp.float32(fan_in))
        params[f"w{idx}"] = jax.random.uniform(
            kw, (fan_in, fan_out), jnp.float32, -bound, bound)
        params[f"b{idx}"] = jax.random.uniform(
            kb, (1, fan_out), jnp.float32, -bound, bound)
    return params


def reference_forward(x, params, compute_dtype=None):
    """Plain-JAX reference mirroring the kernel's dtype handling."""
    w1, w2, w3 = params["w1"], params["w2"], params["w3"]
    if compute_dtype is not None:
        x = x.astype(compute_dtype)
        w1 = w1.astype(compute_dtype)
        w2 = w2.astype(compute_dtype)
        w3 = w3.astype(compute_dtype)
    h1 = jnp.maximum(
        jnp.dot(x, w1, preferred_element_type=jnp.float32) + params["b1"], 0.0)
    h2 = jnp.maximum(
        jnp.dot(h1.astype(w2.dtype), w2,
                preferred_element_type=jnp.float32) + params["b2"], 0.0)
    return jnp.dot(h2.astype(w3.dtype), w3,
                   preferred_element_type=jnp.float32) + params["b3"]


# --------------------------------- demo --------------------------------------


if __name__ == "__main__":
    key = jax.random.PRNGKey(0)
    kparam, kx1, kx2 = jax.random.split(key, 3)
    params = init_params(kparam)

    # 1) Small batch (module-consistent shape): gridless single-call path.
    B = 8
    x = jax.random.normal(kx1, (B, 51), jnp.float32)
    out = jax.block_until_ready(two_hidden_layer_nn(x, params))
    ref = reference_forward(x, params)
    assert out.shape == (B, 9), out.shape
    assert jnp.allclose(out, ref, atol=1e-5, rtol=1e-5), \
        "small-batch mismatch vs reference"

    # 2) Tiled path with a ragged last block (no wrapper-side pad), kept tiny
    #    via max_tile_b/small_batch overrides so the test stays fast.
    B2 = 600
    x2 = jax.random.normal(kx2, (B2, 51), jnp.float32)
    out2 = jax.block_until_ready(
        two_hidden_layer_nn(x2, params, max_tile_b=256, small_batch=128))
    ref2 = reference_forward(x2, params)
    assert out2.shape == (B2, 9), out2.shape
    assert jnp.allclose(out2, ref2, atol=1e-4, rtol=1e-4), \
        "tiled-path mismatch vs reference"

    # 3) bf16 compute path (weights cast in wrapper, x cast in-kernel),
    #    compared against a matching-precision JAX reference.
    out3 = jax.block_until_ready(
        two_hidden_layer_nn(x2, params, compute_dtype=jnp.bfloat16,
                            max_tile_b=256, small_batch=128))
    ref3 = reference_forward(x2, params, compute_dtype=jnp.bfloat16)
    assert jnp.allclose(out3, ref3, atol=1e-2, rtol=1e-2), \
        "bf16-path mismatch vs bf16 reference"

    print("KERNEL_OK")
</pallas_src>

<mosaic_0001>
module attributes {stable_mosaic.version = 11 : i64} {
  func.func @_mlp_kernel(%arg0: memref<8x51xf32, #tpu.memory_space<vmem>>, %arg1: memref<51x128xf32, #tpu.memory_space<vmem>>, %arg2: memref<1x128xf32, #tpu.memory_space<vmem>>, %arg3: memref<128x64xf32, #tpu.memory_space<vmem>>, %arg4: memref<1x64xf32, #tpu.memory_space<vmem>>, %arg5: memref<64x9xf32, #tpu.memory_space<vmem>>, %arg6: memref<1x9xf32, #tpu.memory_space<vmem>>, %arg7: memref<8x9xf32, #tpu.memory_space<vmem>>) attributes {dimension_semantics = [], scalar_prefetch = 0 : i64, scratch_operands = 0 : i64, tpu.core_type = #tpu.core_type<tc>} {
    %c0 = arith.constant 0 : index
    %c0_0 = arith.constant 0 : index
    %0 = vector.load %arg0[%c0, %c0_0] : memref<8x51xf32, #tpu.memory_space<vmem>>, vector<8x51xf32>
    %c0_1 = arith.constant 0 : index
    %c0_2 = arith.constant 0 : index
    %1 = vector.load %arg1[%c0_1, %c0_2] : memref<51x128xf32, #tpu.memory_space<vmem>>, vector<51x128xf32>
    %cst = arith.constant dense<0.000000e+00> : vector<8x128xf32>
    %2 = tpu.matmul %0, %1, %cst {dimension_numbers = #tpu.dot_dimension_numbers<[1], [0], [0], [1], [0, 0, 1, 1], [], []>} : vector<8x51xf32>, vector<51x128xf32>, vector<8x128xf32> -> vector<8x128xf32>
    %c0_3 = arith.constant 0 : index
    %c0_4 = arith.constant 0 : index
    %3 = vector.load %arg2[%c0_3, %c0_4] : memref<1x128xf32, #tpu.memory_space<vmem>>, vector<1x128xf32>
    %4 = vector.broadcast %3 : vector<1x128xf32> to vector<8x128xf32>
    %5 = arith.addf %2, %4 : vector<8x128xf32>
    %cst_5 = arith.constant 0.000000e+00 : f32
    %6 = vector.broadcast %cst_5 : f32 to vector<8x128xf32>
    %7 = arith.maximumf %5, %6 : vector<8x128xf32>
    %c0_6 = arith.constant 0 : index
    %c0_7 = arith.constant 0 : index
    %8 = vector.load %arg3[%c0_6, %c0_7] : memref<128x64xf32, #tpu.memory_space<vmem>>, vector<128x64xf32>
    %cst_8 = arith.constant dense<0.000000e+00> : vector<8x64xf32>
    %9 = tpu.matmul %7, %8, %cst_8 {dimension_numbers = #tpu.dot_dimension_numbers<[1], [0], [0], [1], [0, 0, 1, 1], [], []>} : vector<8x128xf32>, vector<128x64xf32>, vector<8x64xf32> -> vector<8x64xf32>
    %c0_9 = arith.constant 0 : index
    %c0_10 = arith.constant 0 : index
    %10 = vector.load %arg4[%c0_9, %c0_10] : memref<1x64xf32, #tpu.memory_space<vmem>>, vector<1x64xf32>
    %11 = vector.broadcast %10 : vector<1x64xf32> to vector<8x64xf32>
    %12 = arith.addf %9, %11 : vector<8x64xf32>
    %cst_11 = arith.constant 0.000000e+00 : f32
    %13 = vector.broadcast %cst_11 : f32 to vector<8x64xf32>
    %14 = arith.maximumf %12, %13 : vector<8x64xf32>
    %c0_12 = arith.constant 0 : index
    %c0_13 = arith.constant 0 : index
    %15 = vector.load %arg5[%c0_12, %c0_13] : memref<64x9xf32, #tpu.memory_space<vmem>>, vector<64x9xf32>
    %cst_14 = arith.constant dense<0.000000e+00> : vector<8x9xf32>
    %16 = tpu.matmul %14, %15, %cst_14 {dimension_numbers = #tpu.dot_dimension_numbers<[1], [0], [0], [1], [0, 0, 1, 1], [], []>} : vector<8x64xf32>, vector<64x9xf32>, vector<8x9xf32> -> vector<8x9xf32>
    %c0_15 = arith.constant 0 : index
    %c0_16 = arith.constant 0 : index
    %17 = vector.load %arg6[%c0_15, %c0_16] : memref<1x9xf32, #tpu.memory_space<vmem>>, vector<1x9xf32>
    %18 = vector.broadcast %17 : vector<1x9xf32> to vector<8x9xf32>
    %19 = arith.addf %16, %18 : vector<8x9xf32>
    %c0_17 = arith.constant 0 : index
    %c0_18 = arith.constant 0 : index
    %20 = vector.load %arg7[%c0_17, %c0_18] : memref<8x9xf32, #tpu.memory_space<vmem>>, vector<8x9xf32>
    tpu.vector_store %arg7[%c0_17, %c0_18], %19 {strides = array<i32>} : memref<8x9xf32, #tpu.memory_space<vmem>>, vector<8x9xf32>,
    return
  }
}

</mosaic_0001>

<llo_original>
// kernel: tpu_custom_call.1
$region0: #{tpu_custom_call.1}
  #allocation0 [shape = 'u32[]', space=smem, size = 0x4, offset = 0x4, fixed_abs, tag = 'smem constant byte address 0x4 - core index']
  #allocation1 [shape = 'u32[72,128]{1,0:T(1,128)}', space=vmem, size = 0x9000, scoped, tag = 'internal scratch']
  %s0 = inlined_call_operand.vmem [shape: f32[8,51], index: 0, kind: input, shape index: {}]
  %s1 = inlined_call_operand.vmem [shape: f32[51,128], index: 1, kind: input, shape index: {}]
  %s2 = inlined_call_operand.vmem [shape: f32[1,128], index: 2, kind: input, shape index: {}]
  %s3 = inlined_call_operand.vmem [shape: f32[128,64], index: 3, kind: input, shape index: {}]
  %s4 = inlined_call_operand.vmem [shape: f32[1,64], index: 4, kind: input, shape index: {}]
  %s5 = inlined_call_operand.vmem [shape: f32[64,9], index: 5, kind: input, shape index: {}]
  %s6 = inlined_call_operand.vmem [shape: f32[1,9], index: 6, kind: input, shape index: {}]
  %s7 = inlined_call_operand.hbm [shape: f32[8,9], index: 7, kind: output, shape index: {}]
  %s8 = sld [smem:[#allocation0]]
  $region38: #{tpu_custom_call.1} parent=0
    _
  %s10 = ssub.s32 1, %s8
  %s11 = scalar_select 0, %s10, %s8
  $region1: #{tpu_custom_call.1} parent=0
    #allocation2 [shape = 'u8[4096]{0}', space=vmem, size = 0x1000, scoped, tag = 'output window, operand 0, single buffered']
    #allocation3 [shape = 's32[1]{0}', space=sflag, size = 0x4, scoped, tag = 'scoped memory for tpu_custom_call.1']
    %12 = vsyncpa [#allocation3], 0
    // Predicated region
    $region2: #{tpu_custom_call.1} parent=1 // pred_check
      _
    $region3: #{tpu_custom_call.1} parent=1 // pred_check_branch
      %14 = sbr.rel (0) target = $region5
    $region4: #{tpu_custom_call.1} parent=1 // pred_region
      _
    $region5: #{tpu_custom_call.1} parent=1 // pred_fallthru
      _
    // Predicated region
    $region6: #{tpu_custom_call.1} parent=1 // pred_check
      _
    $region7: #{tpu_custom_call.1} parent=1 // pred_check_branch
      %16 = sbr.rel (0) target = $region9
    $region8: #{tpu_custom_call.1} parent=1 // pred_region
      _
    $region9: #{tpu_custom_call.1} parent=1 // pred_fallthru
      _
    // Predicated region
    $region10: #{tpu_custom_call.1} parent=1 // pred_check
      _
    $region11: #{tpu_custom_call.1} parent=1 // pred_check_branch
      %18 = sbr.rel (0) target = $region13
    $region12: #{tpu_custom_call.1} parent=1 // pred_region
      _
    $region13: #{tpu_custom_call.1} parent=1 // pred_fallthru
      _
    // Predicated region
    $region14: #{tpu_custom_call.1} parent=1 // pred_check
      _
    $region15: #{tpu_custom_call.1} parent=1 // pred_check_branch
      %20 = sbr.rel (0) target = $region17
    $region16: #{tpu_custom_call.1} parent=1 // pred_region
      _
    $region17: #{tpu_custom_call.1} parent=1 // pred_fallthru
      _
    // Predicated region
    $region18: #{tpu_custom_call.1} parent=1 // pred_check
      _
    $region19: #{tpu_custom_call.1} parent=1 // pred_check_branch
      %22 = sbr.rel (0) target = $region21
    $region20: #{tpu_custom_call.1} parent=1 // pred_region
      _
    $region21: #{tpu_custom_call.1} parent=1 // pred_fallthru
      _
    // Predicated region
    $region22: #{tpu_custom_call.1} parent=1 // pred_check
      _
    $region23: #{tpu_custom_call.1} parent=1 // pred_check_branch
      %24 = sbr.rel (0) target = $region25
    $region24: #{tpu_custom_call.1} parent=1 // pred_region
      _
    $region25: #{tpu_custom_call.1} parent=1 // pred_fallthru
      _
    // Predicated region
    $region26: #{tpu_custom_call.1} parent=1 // pred_check
      _
    $region27: #{tpu_custom_call.1} parent=1 // pred_check_branch
      %26 = sbr.rel (0) target = $region29
    $region28: #{tpu_custom_call.1} parent=1 // pred_region
      _
    $region29: #{tpu_custom_call.1} parent=1 // pred_fallthru
      _
    %v27 = vld [vmem:[%s0] sm:$0xff]
    %v28 = vld [vmem:[%s1] sm:$0xff]
    %v29 = vld [vmem:[%s1 + $0x8] sm:$0xff]
    %v30 = vld [vmem:[%s1 + $0x10] sm:$0xff]
    %v31 = vld [vmem:[%s1 + $0x18] sm:$0xff]
    %v32 = vld [vmem:[%s1 + $0x20] sm:$0xff]
    %v33 = vld [vmem:[%s1 + $0x28] sm:$0xff]
    %v34 = vld [vmem:[%s1 + $0x30] sm:$0x7]
    %v35 = vld [vmem:[%s2] sm:$0x1]
    %v37 = vperm.slane %v35, 0
    %vm39 = vcmask 416768
    %v41 = vsel %vm39, %v27, 0
    %vm43 = vcmask 1042432
    %v45 = vsel %vm43, %v34, 0
    %47 = vmatpush.msra.mxu0 0.0
    %48 = vmatpush.msra.mxu0 0.0
    %49 = vmatpush.msra.mxu0 0.0
    %50 = vmatpush.msra.mxu0 0.0
    %51 = vmatpush.msra.mxu0 0.0
    %52 = vmatpush.msra.mxu0 0.0
    %53 = vmatpush.msra.mxu0 0.0
    %54 = vmatpush.msra.mxu0 0.0
    %55 = vmatpush.msra.mxu0 0.0
    %56 = vmatpush.msra.mxu0 %v45
    %57 = vmatpush.msra.mxu0 %v33
    %58 = vmatpush.msra.mxu0 %v32
    %59 = vmatpush.msra.mxu0 %v31
    %60 = vmatpush.msra.mxu0 %v30
    %61 = vmatpush.msra.mxu0 %v29
    %62 = vmatpush.msra.mxu0 %v28
    %63 = vmatmul.f32.gmra.mxu0 %v41
    %v64 = vpop.f32.mrf.mxu0
    %v65 = vadd.f32 %v37, %v64
    %66 = vdwg.mxu0
    %v67 = vmax.f32 %v65, 0.0
    %v68 = vld [vmem:[%s3] sm:$0xff]
    %v69 = vld [vmem:[%s3 + $0x8] sm:$0xff]
    %v70 = vld [vmem:[%s3 + $0x10] sm:$0xff]
    %v71 = vld [vmem:[%s3 + $0x18] sm:$0xff]
    %v72 = vld [vmem:[%s3 + $0x20] sm:$0xff]
    %v73 = vld [vmem:[%s3 + $0x28] sm:$0xff]
    %v74 = vld [vmem:[%s3 + $0x30] sm:$0xff]
    %v75 = vld [vmem:[%s3 + $0x38] sm:$0xff]
    %v76 = vld [vmem:[%s3 + $0x40] sm:$0xff]
    %v77 = vld [vmem:[%s3 + $0x48] sm:$0xff]
    %v78 = vld [vmem:[%s3 + $0x50] sm:$0xff]
    %v79 = vld [vmem:[%s3 + $0x58] sm:$0xff]
    %v80 = vld [vmem:[%s3 + $0x60] sm:$0xff]
    %v81 = vld [vmem:[%s3 + $0x68] sm:$0xff]
    %v82 = vld [vmem:[%s3 + $0x70] sm:$0xff]
    %v83 = vld [vmem:[%s3 + $0x78] sm:$0xff]
    %v84 = vld [vmem:[%s4] sm:$0x1]
    %v86 = vperm.slane %v84, 0
    %88 = vmatpush.msra.mxu0 %v83
    %89 = vmatpush.msra.mxu0 %v82
    %90 = vmatpush.msra.mxu0 %v81
    %91 = vmatpush.msra.mxu0 %v80
    %92 = vmatpush.msra.mxu0 %v79
    %93 = vmatpush.msra.mxu0 %v78
    %94 = vmatpush.msra.mxu0 %v77
    %95 = vmatpush.msra.mxu0 %v76
    %96 = vmatpush.msra.mxu0 %v75
    %97 = vmatpush.msra.mxu0 %v74
    %98 = vmatpush.msra.mxu0 %v73
    %99 = vmatpush.msra.mxu0 %v72
    %100 = vmatpush.msra.mxu0 %v71
    %101 = vmatpush.msra.mxu0 %v70
    %102 = vmatpush.msra.mxu0 %v69
    %103 = vmatpush.msra.mxu0 %v68
    %104 = vmatmul.f32.gmra.mxu0 %v67
    %v105 = vpop.f32.mrf.mxu0
    %v106 = vadd.f32 %v86, %v105
    %107 = vdwg.mxu0
    %v108 = vmax.f32 %v106, 0.0
    %v109 = vld [vmem:[%s5] sm:$0xff]
    %v110 = vld [vmem:[%s5 + $0x8] sm:$0xff]
    %v111 = vld [vmem:[%s5 + $0x10] sm:$0xff]
    %v112 = vld [vmem:[%s5 + $0x18] sm:$0xff]
    %v113 = vld [vmem:[%s5 + $0x20] sm:$0xff]
    %v114 = vld [vmem:[%s5 + $0x28] sm:$0xff]
    %v115 = vld [vmem:[%s5 + $0x30] sm:$0xff]
    %v116 = vld [vmem:[%s5 + $0x38] sm:$0xff]
    %v117 = vld [vmem:[%s6] sm:$0x1]
    %v119 = vperm.slane %v117, 0
    %vm121 = vcmask 523264
    %v123 = vsel %vm121, %v108, 0
    %125 = vmatpush.msra.mxu0 0.0
    %126 = vmatpush.msra.mxu0 0.0
    %127 = vmatpush.msra.mxu0 0.0
    %128 = vmatpush.msra.mxu0 0.0
    %129 = vmatpush.msra.mxu0 0.0
    %130 = vmatpush.msra.mxu0 0.0
    %131 = vmatpush.msra.mxu0 0.0
    %132 = vmatpush.msra.mxu0 0.0
    %133 = vmatpush.msra.mxu0 %v116
    %134 = vmatpush.msra.mxu0 %v115
    %135 = vmatpush.msra.mxu0 %v114
    %136 = vmatpush.msra.mxu0 %v113
    %137 = vmatpush.msra.mxu0 %v112
    %138 = vmatpush.msra.mxu0 %v111
    %139 = vmatpush.msra.mxu0 %v110
    %140 = vmatpush.msra.mxu0 %v109
    %141 = vmatmul.f32.gmra.mxu0 %v123
    %v142 = vpop.f32.mrf.mxu0
    %v143 = vadd.f32 %v119, %v142
    %144 = vdwg.mxu0
    %vm145 = vcmask 72704
    %146 = vst.msk [vmem:[#allocation2] sm:$0xff] %vm145, %v143
    // Predicated region
    $region30: #{tpu_custom_call.1} parent=1 // pred_check
      _
    $region31: #{tpu_custom_call.1} parent=1 // pred_check_branch
      %148 = sbr.rel (0) target = $region33
    $region32: #{tpu_custom_call.1} parent=1 // pred_region
      %150 = vsyncadd [#allocation3], 0
      %s152 = sshll.u32 [#allocation2], 4
      %s153 = int_to_ptr.vmem [resolvable:$true] %s152
      %s154 = sshll.u32 %s7, 4
      %s155 = int_to_ptr.hbm [resolvable:$true] %s154
      %157 = dma.vmem_to_hbm [thread:$0]  %s153, 128, %s155, [#allocation3]
    $region33: #{tpu_custom_call.1} parent=1 // pred_fallthru
      _
    // Predicated region
    $region34: #{tpu_custom_call.1} parent=1 // pred_check
      _
    $region35: #{tpu_custom_call.1} parent=1 // pred_check_branch
      %159 = sbr.rel (0) target = $region37
    $region36: #{tpu_custom_call.1} parent=1 // pred_region
      %161 = dma.done [#allocation3], 128
    $region37: #{tpu_custom_call.1} parent=1 // pred_fallthru
      _
    %162 = vsyncpa [#allocation3], 1

</llo_original>
